<compile_context>
chip_gen: v7x
topology: tpu7x:2x2x1
jax: 0.10.0
libtpu: 0.0.40
codegen_flags: <defaults>
</compile_context>

<pallas_src>
import jax
import jax.numpy as jnp
from jax.experimental import pallas as pl
from jax.experimental.pallas import tpu as pltpu


def adapter_kernel(x_ref, w1t_ref, w2t_ref, o_ref):
    # x_ref:   (tm, C)      streamed input row tile
    # w1t_ref: (C, hidden)  first linear weight, pre-transposed to (in, out)
    # w2t_ref: (hidden, C)  second linear weight, pre-transposed to (in, out)
    # o_ref:   (tm, C)      output row tile
    x = x_ref[...]
    h = jnp.dot(x, w1t_ref[...], preferred_element_type=jnp.float32)
    h = jnp.maximum(h, 0.0)                                    # ReLU (VPU)
    # Explicit cast: no-op for f32 weights; intentional truncation if weights
    # are stored in bf16 (mixed-precision choice).
    y = jnp.dot(h.astype(w2t_ref.dtype), w2t_ref[...],
                preferred_element_type=jnp.float32)
    y = jnp.maximum(y, 0.0)                                    # ReLU (VPU)
    o_ref[...] = y.astype(o_ref.dtype)


def _round_up(n, m):
    return ((n + m - 1) // m) * m


def prepare_adapter_params(w1, w2):
    """Transpose PyTorch-layout (out, in) weights to (in, out) ONCE at init.

    w1: (C//r, C), w2: (C, C//r)  ->  w1t: (C, C//r), w2t: (C//r, C)
    """
    return jnp.asarray(w1).T, jnp.asarray(w2).T


def _vmem_limit_bytes():
    """~3/4 of VMEM capacity: 48 MiB on v7x (64 MiB), 96 MiB on v5e/v6e (128 MiB)."""
    try:
        cap = int(pltpu.get_tpu_info().vmem_capacity_bytes)
    except Exception:
        cap = 64 << 20          # conservative fallback (v7x-sized)
    return max(32 << 20, (cap * 3) // 4)


def adapter_forward(x, w1t, w2t, *, tm=None, target_block_bytes=3 << 20):
    """x: (..., C).  w1t: (C, C//r), w2t: (C//r, C) pre-transposed weights."""
    orig_shape = x.shape
    C = orig_shape[-1]
    assert w1t.shape[0] == C and w2t.shape[1] == C, "weight/input shape mismatch"
    hidden = w1t.shape[1]
    assert w2t.shape[0] == hidden

    x2d = x.reshape(-1, C)
    M = x2d.shape[0]
    itemsize = jnp.dtype(x2d.dtype).itemsize
    w_itemsize = jnp.dtype(w1t.dtype).itemsize

    vmem_limit = _vmem_limit_bytes()

    # --- Row-tile sizing -----------------------------------------------------
    # VMEM budget: double-buffered x tile + double-buffered out tile +
    # double-buffered (tiny) weights + f32 temporaries (h, y), with headroom.
    weight_bytes = 2 * 2 * C * hidden * w_itemsize
    per_row_bytes = 4 * C * itemsize + (hidden + C) * 4
    budget = vmem_limit - weight_bytes - (8 << 20)
    tm_budget = (budget // per_row_bytes) // 8 * 8 if budget > 8 * per_row_bytes else 8
    tm_budget = max(8, tm_budget)

    # Target ~target_block_bytes per streamed block so per-step overhead is
    # amortized (multi-MiB blocks -> ~85%+ of HBM roofline).
    tm_target = max(8, (target_block_bytes // (itemsize * C)) // 8 * 8)
    if tm is not None:
        tm_target = max(8, _round_up(int(tm), 8))

    tm_eff = min(tm_target, tm_budget, _round_up(M, 8))
    # Keep grid length >= 2 so the "parallel" row axis splits across both
    # TensorCores on v7x (single giant tile would idle one TC).
    if M > 8:
        tm_eff = min(tm_eff, _round_up(pl.cdiv(M, 2), 8))
    tm_eff = max(8, tm_eff)

    grid = (pl.cdiv(M, tm_eff),)  # partial last block handled by Pallas masking

    cost = pl.CostEstimate(
        flops=4 * M * C * hidden,
        transcendentals=0,
        bytes_accessed=itemsize * 2 * M * C + w_itemsize * 2 * C * hidden,
    )

    out = pl.pallas_call(
        adapter_kernel,
        out_shape=jax.ShapeDtypeStruct((M, C), x2d.dtype),
        grid=grid,
        in_specs=[
            pl.BlockSpec((tm_eff, C), lambda i: (i, 0)),   # streamed rows
            pl.BlockSpec((C, hidden), lambda i: (0, 0)),   # W1^T (grid-invariant)
            pl.BlockSpec((hidden, C), lambda i: (0, 0)),   # W2^T (grid-invariant)
        ],
        out_specs=pl.BlockSpec((tm_eff, C), lambda i: (i, 0)),
        compiler_params=pltpu.CompilerParams(
            dimension_semantics=("parallel",),   # shard rows across TCs (v7x)
            vmem_limit_bytes=vmem_limit,
        ),
        cost_estimate=cost,
    )(x2d, w1t, w2t)

    return out.reshape(orig_shape)


def adapter_reference(x, w1, w2):
    h = jnp.maximum(x @ w1.T, 0.0)
    return jnp.maximum(h @ w2.T, 0.0)


if __name__ == "__main__":
    key = jax.random.PRNGKey(0)
    k_x, k_w1, k_w2, k_x2, k_x3 = jax.random.split(key, 5)

    # Module config: channel_in=32, reduction=4 -> hidden=8
    channel_in = 32
    reduction = 4
    hidden = channel_in // reduction

    # Deterministic synthetic weights (PyTorch Linear layout: (out, in)).
    w1 = jax.random.normal(k_w1, (hidden, channel_in), dtype=jnp.float32) / jnp.sqrt(channel_in)
    w2 = jax.random.normal(k_w2, (channel_in, hidden), dtype=jnp.float32) / jnp.sqrt(hidden)

    # One-time weight prep (would live at parameter-init time in production).
    w1t, w2t = prepare_adapter_params(w1, w2)

    # --- Test 1: small module-shaped input (batch=2, seq=8, C=32) -> M=16 ---
    x = jax.random.normal(k_x, (2, 8, channel_in), dtype=jnp.float32)
    out = jax.block_until_ready(adapter_forward(x, w1t, w2t))
    ref = adapter_reference(x, w1, w2)
    assert out.shape == x.shape
    assert jnp.allclose(out, ref, atol=1e-5, rtol=1e-5), "mismatch vs reference (test 1)"

    # --- Test 2: multi-step grid + masked partial last block (no padding) ---
    # M = 200 rows, tm=64 -> grid=(4,), last block has only 8 valid rows.
    x_big = jax.random.normal(k_x2, (25, 8, channel_in), dtype=jnp.float32)
    out_big = jax.block_until_ready(adapter_forward(x_big, w1t, w2t, tm=64))
    ref_big = adapter_reference(x_big, w1, w2)
    assert out_big.shape == x_big.shape
    assert jnp.allclose(out_big, ref_big, atol=1e-5, rtol=1e-5), "mismatch vs reference (test 2)"

    # --- Test 3: M not a multiple of 8, single partial block ---
    x_odd = jax.random.normal(k_x3, (5, channel_in), dtype=jnp.float32)
    out_odd = jax.block_until_ready(adapter_forward(x_odd, w1t, w2t))
    ref_odd = adapter_reference(x_odd, w1, w2)
    assert out_odd.shape == x_odd.shape
    assert jnp.allclose(out_odd, ref_odd, atol=1e-5, rtol=1e-5), "mismatch vs reference (test 3)"

    print("KERNEL_OK")
</pallas_src>

<mosaic_0001>
module attributes {stable_mosaic.version = 11 : i64} {
  func.func @adapter_kernel(%arg0: i32, %arg1: memref<8x32xf32, #tpu.memory_space<vmem>>, %arg2: memref<32x8xf32, #tpu.memory_space<vmem>>, %arg3: memref<8x32xf32, #tpu.memory_space<vmem>>, %arg4: memref<8x32xf32, #tpu.memory_space<vmem>>) attributes {dimension_semantics = [#tpu.dimension_semantics<parallel>], iteration_bounds = array<i64: 2>, scalar_prefetch = 0 : i64, scratch_operands = 0 : i64, tpu.core_type = #tpu.core_type<tc>, window_params = [{transform_indices = @transform_0, window_bounds = array<i64: 8, 32>}, {pipeline_mode = #tpu.pipeline_mode<synchronous>, transform_indices = @transform_1, window_bounds = array<i64: 32, 8>}, {pipeline_mode = #tpu.pipeline_mode<synchronous>, transform_indices = @transform_2, window_bounds = array<i64: 8, 32>}, {transform_indices = @transform_3, window_bounds = array<i64: 8, 32>}]} {
    %c0 = arith.constant 0 : index
    %c0_0 = arith.constant 0 : index
    %0 = vector.load %arg1[%c0, %c0_0] : memref<8x32xf32, #tpu.memory_space<vmem>>, vector<8x32xf32>
    %c0_1 = arith.constant 0 : index
    %c0_2 = arith.constant 0 : index
    %1 = vector.load %arg2[%c0_1, %c0_2] : memref<32x8xf32, #tpu.memory_space<vmem>>, vector<32x8xf32>
    %cst = arith.constant dense<0.000000e+00> : vector<8x8xf32>
    %2 = tpu.matmul %0, %1, %cst {dimension_numbers = #tpu.dot_dimension_numbers<[1], [0], [0], [1], [0, 0, 1, 1], [], []>} : vector<8x32xf32>, vector<32x8xf32>, vector<8x8xf32> -> vector<8x8xf32>
    %cst_3 = arith.constant 0.000000e+00 : f32
    %3 = vector.broadcast %cst_3 : f32 to vector<8x8xf32>
    %4 = arith.maximumf %2, %3 : vector<8x8xf32>
    %c0_4 = arith.constant 0 : index
    %c0_5 = arith.constant 0 : index
    %5 = vector.load %arg3[%c0_4, %c0_5] : memref<8x32xf32, #tpu.memory_space<vmem>>, vector<8x32xf32>
    %cst_6 = arith.constant dense<0.000000e+00> : vector<8x32xf32>
    %6 = tpu.matmul %4, %5, %cst_6 {dimension_numbers = #tpu.dot_dimension_numbers<[1], [0], [0], [1], [0, 0, 1, 1], [], []>} : vector<8x8xf32>, vector<8x32xf32>, vector<8x32xf32> -> vector<8x32xf32>
    %cst_7 = arith.constant 0.000000e+00 : f32
    %7 = vector.broadcast %cst_7 : f32 to vector<8x32xf32>
    %8 = arith.maximumf %6, %7 : vector<8x32xf32>
    %c0_8 = arith.constant 0 : index
    %c0_9 = arith.constant 0 : index
    %9 = vector.load %arg4[%c0_8, %c0_9] : memref<8x32xf32, #tpu.memory_space<vmem>>, vector<8x32xf32>
    tpu.vector_store %arg4[%c0_8, %c0_9], %8 {strides = array<i32>} : memref<8x32xf32, #tpu.memory_space<vmem>>, vector<8x32xf32>,
    return
  }
  func.func @transform_0(%arg0: i32) -> (i32, i32) {
    %c0_i32 = arith.constant 0 : i32
    %c0_i32_0 = arith.constant 0 : i32
    return %arg0, %c0_i32 : i32, i32
  }
  func.func @transform_1(%arg0: i32) -> (i32, i32) {
    %c0_i32 = arith.constant 0 : i32
    %c0_i32_0 = arith.constant 0 : i32
    %c0_i32_1 = arith.constant 0 : i32
    return %c0_i32, %c0_i32_0 : i32, i32
  }
  func.func @transform_2(%arg0: i32) -> (i32, i32) {
    %c0_i32 = arith.constant 0 : i32
    %c0_i32_0 = arith.constant 0 : i32
    %c0_i32_1 = arith.constant 0 : i32
    return %c0_i32, %c0_i32_0 : i32, i32
  }
  func.func @transform_3(%arg0: i32) -> (i32, i32) {
    %c0_i32 = arith.constant 0 : i32
    %c0_i32_0 = arith.constant 0 : i32
    return %arg0, %c0_i32 : i32, i32
  }
}

</mosaic_0001>

<llo_original>
// kernel: tpu_custom_call.1
$region0: #{tpu_custom_call.1}
  #allocation0 [shape = 'u32[]', space=smem, size = 0x4, offset = 0x4, fixed_abs, tag = 'smem constant byte address 0x4 - core index']
  #allocation1 [shape = 'u32[144,128]{1,0:T(1,128)}', space=vmem, size = 0x12000, scoped, tag = 'internal scratch']
  %s0 = inlined_call_operand.vmem [shape: f32[16,32], index: 0, kind: input, shape index: {}]
  %s1 = inlined_call_operand.vmem [shape: f32[32,8], index: 1, kind: input, shape index: {}]
  %s2 = inlined_call_operand.vmem [shape: f32[8,32], index: 2, kind: input, shape index: {}]
  %s3 = inlined_call_operand.hbm [shape: f32[16,32], index: 3, kind: output, shape index: {}]
  %s4 = sld [smem:[#allocation0]]
  $region45: #{tpu_custom_call.1} parent=0
    _
  %s6 = ssub.s32 1, %s4
  %s7 = scalar_select 0, %s6, %s4
  $region1: #{tpu_custom_call.1} parent=0
    #allocation2 [shape = 'u8[8192]{0}', space=vmem, size = 0x2000, scoped, tag = 'output window, operand 0']
    #allocation3 [shape = 's32[2]{0}', space=sflag, size = 0x8, scoped, tag = 'scoped memory for tpu_custom_call.1']
    %8 = vsyncpa [#allocation3], 0
    %s9 = scalar_lea.sflag [#allocation3], 1
    %10 = vsyncpa %s9, 0
    loop: start=0, step=1, limit=4
    $region2: #{tpu_custom_call.1} parent=1 // loop_pre_header
      _
    $region3: #{tpu_custom_call.1} parent=1 // loop_header
      %s12 = sphi 0, %s16
      %p13 = scmp.ge.s32.totalorder %s12, 4
      %s22 = sphi 0, %s24
      %s25 = sphi 0, %s22
      %s26 = sphi 0, %s25
      %s42 = sphi 0, %s26
      %s46 = sphi 0, %s46
      %s48 = sphi 0, %s46
      %s49 = sphi 0, %s48
      %s63 = sphi 0, %s49
      %s67 = sphi 0, %s67
      %s69 = sphi 0, %s67
      %s70 = sphi 0, %s69
      %s84 = sphi 0, %s70
      %s90 = sphi 0, %s92
      %s93 = sphi 0, %s90
      %s94 = sphi 0, %s93
      %s110 = sphi 0, %s94
    $region4: #{tpu_custom_call.1} parent=1 // loop_header_branch
      %15 = sbr.rel (%p13) target = $region8
    $region5: #{tpu_custom_call.1} parent=1 // loop_body
      %s17 = ssub.s32 %s12, 1
      %s18 = ssub.s32 %s12, 2
      %s19 = sadd.s32 %s12, 1
      %s20 = ssub.s32 %s12, %s19
      %p21 = scmp.eq.s32.totalorder %s20, 0
      %s23 = sadd.s32 %s22, 1
      %s24 = scalar_select %p21, %s22, %s23
      %p27 = pneg %p21
      %p28 = scmp.eq.s32.totalorder %s12, 1
      %p29 = por %p27, %p28
      %p30 = scmp.ne.s32.totalorder %s22, %s25
      %p31 = scmp.eq.s32.totalorder %s12, 0
      %p32 = por %p30, %p31
      %p33 = scmp.ne.s32.totalorder %s22, %s25
      %p34 = scmp.eq.s32.totalorder %s17, 1
      %p35 = por %p33, %p34
      %p36 = scmp.ne.s32.totalorder %s25, %s26
      %p37 = scmp.eq.s32.totalorder %s17, 0
      %p38 = por %p36, %p37
      %p39 = scmp.ne.s32.totalorder %s25, %s26
      %p40 = scmp.eq.s32.totalorder %s18, 1
      %p41 = por %p39, %p40
      %p43 = scmp.ne.s32.totalorder %s26, %s42
      %p44 = scmp.eq.s32.totalorder %s18, 0
      %p45 = por %p43, %p44
      %s47 = sadd.s32 %s46, 1
      %p50 = scmp.eq.s32.totalorder %s12, 1
      %p51 = scmp.ne.s32.totalorder %s46, %s48
      %p52 = scmp.eq.s32.totalorder %s12, 0
      %p53 = por %p51, %p52
      %p54 = scmp.ne.s32.totalorder %s46, %s48
      %p55 = scmp.eq.s32.totalorder %s17, 1
      %p56 = por %p54, %p55
      %p57 = scmp.ne.s32.totalorder %s48, %s49
      %p58 = scmp.eq.s32.totalorder %s17, 0
      %p59 = por %p57, %p58
      %p60 = scmp.ne.s32.totalorder %s48, %s49
      %p61 = scmp.eq.s32.totalorder %s18, 1
      %p62 = por %p60, %p61
      %p64 = scmp.ne.s32.totalorder %s49, %s63
      %p65 = scmp.eq.s32.totalorder %s18, 0
      %p66 = por %p64, %p65
      %s68 = sadd.s32 %s67, 1
      %p71 = scmp.eq.s32.totalorder %s12, 1
      %p72 = scmp.ne.s32.totalorder %s67, %s69
      %p73 = scmp.eq.s32.totalorder %s12, 0
      %p74 = por %p72, %p73
      %p75 = scmp.ne.s32.totalorder %s67, %s69
      %p76 = scmp.eq.s32.totalorder %s17, 1
      %p77 = por %p75, %p76
      %p78 = scmp.ne.s32.totalorder %s69, %s70
      %p79 = scmp.eq.s32.totalorder %s17, 0
      %p80 = por %p78, %p79
      %p81 = scmp.ne.s32.totalorder %s69, %s70
      %p82 = scmp.eq.s32.totalorder %s18, 1
      %p83 = por %p81, %p82
      %p85 = scmp.ne.s32.totalorder %s70, %s84
      %p86 = scmp.eq.s32.totalorder %s18, 0
      %p87 = por %p85, %p86
      %s88 = ssub.s32 %s12, %s19
      %p89 = scmp.eq.s32.totalorder %s88, 0
      %s91 = sadd.s32 %s90, 1
      %s92 = scalar_select %p89, %s90, %s91
      %p95 = pneg %p89
      %p96 = scmp.eq.s32.totalorder %s12, 1
      %p97 = por %p95, %p96
      %p98 = scmp.ne.s32.totalorder %s90, %s93
      %p99 = scmp.eq.s32.totalorder %s12, 0
      %p100 = por %p98, %p99
      %p101 = scmp.ne.s32.totalorder %s90, %s93
      %p102 = scmp.eq.s32.totalorder %s17, 1
      %p103 = por %p101, %p102
      %p104 = scmp.ne.s32.totalorder %s93, %s94
      %p105 = scmp.eq.s32.totalorder %s17, 0
      %p106 = por %p104, %p105
      %p107 = scmp.ne.s32.totalorder %s93, %s94
      %p108 = scmp.eq.s32.totalorder %s18, 1
      %p109 = por %p107, %p108
      %p111 = scmp.ne.s32.totalorder %s94, %s110
      %p112 = scmp.eq.s32.totalorder %s18, 0
      %p113 = por %p111, %p112
      %p114 = scmp.le.s32.totalorder 1, %s12
      %p115 = scmp.lt.s32.totalorder %s12, 3
      %p116 = pnand %p114, %p115
      %p117 = pneg %p116
      // Predicated region
      $region9: #{tpu_custom_call.1} parent=5 // pred_check
        _
      $region10: #{tpu_custom_call.1} parent=5 // pred_check_branch
        %119 = sbr.rel (%p116) target = $region12
      $region11: #{tpu_custom_call.1} parent=5 // pred_region
        %s120 = ssub.s32 %s12, 1
        // Predicated region
        $region13: #{tpu_custom_call.1} parent=11 // pred_check
          %p121 = pneg %p59
        $region14: #{tpu_custom_call.1} parent=11 // pred_check_branch
          %123 = sbr.rel (%p121) target = $region16
        $region15: #{tpu_custom_call.1} parent=11 // pred_region
          _
        $region16: #{tpu_custom_call.1} parent=11 // pred_fallthru
          _
        // Predicated region
        $region17: #{tpu_custom_call.1} parent=11 // pred_check
          %p124 = pneg %p80
        $region18: #{tpu_custom_call.1} parent=11 // pred_check_branch
          %126 = sbr.rel (%p124) target = $region20
        $region19: #{tpu_custom_call.1} parent=11 // pred_region
          _
        $region20: #{tpu_custom_call.1} parent=11 // pred_fallthru
          _
      $region12: #{tpu_custom_call.1} parent=5 // pred_fallthru
        _
      %p127 = scmp.lt.s32.totalorder %s12, 2
      // Predicated region
      $region21: #{tpu_custom_call.1} parent=5 // pred_check
        %p128 = pneg %p127
      $region22: #{tpu_custom_call.1} parent=5 // pred_check_branch
        %130 = sbr.rel (%p128) target = $region24
      $region23: #{tpu_custom_call.1} parent=5 // pred_region
        // Predicated region
        $region25: #{tpu_custom_call.1} parent=23 // pred_check
          %p131 = pneg %p32
        $region26: #{tpu_custom_call.1} parent=23 // pred_check_branch
          %133 = sbr.rel (%p131) target = $region28
        $region27: #{tpu_custom_call.1} parent=23 // pred_region
          %p134 = scmp.lt.s32.totalorder %s12, 1
          %s135 = scalar_select %p134, %s12, 1
          %s136 = smul.addr %s135, 8
          %s137 = scalar_lea.vmem %s0, %s136
        $region28: #{tpu_custom_call.1} parent=23 // pred_fallthru
          _
      $region24: #{tpu_custom_call.1} parent=5 // pred_fallthru
        _
      %p138 = scmp.le.s32.totalorder 1, %s12
      %p139 = scmp.lt.s32.totalorder %s12, 3
      %p140 = pnand %p138, %p139
      %p141 = pneg %p140
      // Predicated region
      $region29: #{tpu_custom_call.1} parent=5 // pred_check
        _
      $region30: #{tpu_custom_call.1} parent=5 // pred_check_branch
        %143 = sbr.rel (%p140) target = $region32
      $region31: #{tpu_custom_call.1} parent=5 // pred_region
        %s144 = ssub.s32 %s12, 1
        %p145 = scmp.lt.s32.totalorder %s17, 1
        %s146 = scalar_select %p145, %s17, 1
        %s147 = smul.addr %s146, 8
        %s148 = scalar_lea.vmem %s0, %s147
        %p149 = pneg %p38
        %p150 = pneg %p35
        %p151 = pneg %p59
        %p152 = pneg %p56
        %p153 = pneg %p80
        %p154 = pneg %p77
        %p155 = pneg %p106
        %p156 = pneg %p103
        %s157 = sand.u32 %s93, 1
        %s158 = scalar_lea.sflag [#allocation3], %s157
        %s159 = sand.u32 %s93, 1
        %s160 = smul.addr %s159, 8
        %s161 = scalar_lea.vmem [#allocation2], %s160
        %p162 = scmp.lt.s32.totalorder %s17, 1
        %s163 = scalar_select %p162, %s17, 1
        %s164 = smul.addr %s163, 8
        %s165 = scalar_lea.vmem %s0, %s164
        %v166 = vld [vmem:[%s165] sm:$0xff]
        %v167 = vld [vmem:[%s1] sm:$0xff]
        %v168 = vld [vmem:[%s1 + $0x8] sm:$0xff]
        %v169 = vld [vmem:[%s1 + $0x10] sm:$0xff]
        %v170 = vld [vmem:[%s1 + $0x18] sm:$0xff]
        %vm171 = vcmask 261120
        %v173 = vsel %vm171, %v166, 0
        %175 = vmatprep.subr.mxu0 0.0
        %176 = vmatpush1.msra.mxu0 %v167
        %177 = vmatprep.subr.mxu0 0.0
        %178 = vmatpush1.msra.mxu0 %v168
        %179 = vmatprep.subr.mxu0 0.0
        %180 = vmatpush1.msra.mxu0 %v169
        %181 = vmatprep.subr.mxu0 0.0
        %182 = vmatpush1.msra.mxu0 %v170
        %183 = vmatprep.subr.mxu0 0.0
        %184 = vmatpush1.msra.mxu0 0.0
        %185 = vmatprep.subr.mxu0 0.0
        %186 = vmatpush1.msra.mxu0 0.0
        %187 = vmatprep.subr.mxu0 0.0
        %188 = vmatpush1.msra.mxu0 0.0
        %189 = vmatprep.subr.mxu0 0.0
        %190 = vmatpush1.msra.mxu0 0.0
        %191 = vmatprep.subr.mxu0 0.0
        %192 = vmatpush1.msra.mxu0 0.0
        %193 = vmatprep.subr.mxu0 0.0
        %194 = vmatpush1.msra.mxu0 0.0
        %195 = vmatprep.subr.mxu0 0.0
        %196 = vmatpush1.msra.mxu0 0.0
        %197 = vmatprep.subr.mxu0 0.0
        %198 = vmatpush1.msra.mxu0 0.0
        %199 = vmatprep.subr.mxu0 0.0
        %200 = vmatpush1.msra.mxu0 0.0
        %201 = vmatprep.subr.mxu0 0.0
        %202 = vmatpush1.msra.mxu0 0.0
        %203 = vmatprep.subr.mxu0 0.0
        %204 = vmatpush1.msra.mxu0 0.0
        %205 = vmatprep.subr.mxu0 0.0
        %206 = vmatpush1.msra.mxu0 0.0
        %207 = vmatprep.subr.mxu0 0.0
        %208 = vmatpush1.msra.mxu0 0.0
        %209 = vmatprep.subr.mxu0 0.0
        %210 = vmatpush1.msra.mxu0 0.0
        %211 = vmatprep.subr.mxu0 0.0
        %212 = vmatpush1.msra.mxu0 0.0
        %213 = vmatprep.subr.mxu0 0.0
        %214 = vmatpush1.msra.mxu0 0.0
        %215 = vmatprep.subr.mxu0 0.0
        %216 = vmatpush1.msra.mxu0 0.0
        %217 = vmatprep.subr.mxu0 0.0
        %218 = vmatpush1.msra.mxu0 0.0
        %219 = vmatprep.subr.mxu0 0.0
        %220 = vmatpush1.msra.mxu0 0.0
        %221 = vmatprep.subr.mxu0 0.0
        %222 = vmatpush1.msra.mxu0 0.0
        %223 = vmatprep.subr.mxu0 0.0
        %224 = vmatpush1.msra.mxu0 0.0
        %225 = vmatprep.subr.mxu0 0.0
        %226 = vmatpush1.msra.mxu0 0.0
        %227 = vmatprep.subr.mxu0 0.0
        %228 = vmatpush1.msra.mxu0 0.0
        %229 = vmatprep.subr.mxu0 0.0
        %230 = vmatpush1.msra.mxu0 0.0
        %231 = vmatprep.subr.mxu0 0.0
        %232 = vmatpush1.msra.mxu0 0.0
        %233 = vmatprep.subr.mxu0 0.0
        %234 = vmatpush1.msra.mxu0 0.0
        %235 = vmatprep.subr.mxu0 0.0
        %236 = vmatpush1.msra.mxu0 0.0
        %237 = vmatprep.subr.mxu0 0.0
        %238 = vmatpush1.msra.mxu0 0.0
        %239 = vmatprep.mubr.f32.mxu0 0.0
        %240 = vmatmul.mubr.f32.gmra.mrb[0].mxu0 %v173
        %v241 = vpop.f32.mrb[0].mxu0
        %v242 = vadd.f32 0.0, %v241
        %v243 = vpop.f32.mrb[0].mxu0
        %244 = vdwg.mxu0
        %v245 = vmax.f32 %v242, 0.0
        %v246 = vld [vmem:[%s2] sm:$0xff]
        %vm247 = vcmask 64512
        %v249 = vsel %vm247, %v245, 0
        %251 = vmatprep.subr.mxu0 0.0
        %252 = vmatpush1.msra.mxu0 %v246
        %253 = vmatprep.subr.mxu0 0.0
        %254 = vmatpush1.msra.mxu0 0.0
        %255 = vmatprep.subr.mxu0 0.0
        %256 = vmatpush1.msra.mxu0 0.0
        %257 = vmatprep.subr.mxu0 0.0
        %258 = vmatpush1.msra.mxu0 0.0
        %259 = vmatprep.subr.mxu0 0.0
        %260 = vmatpush1.msra.mxu0 0.0
        %261 = vmatprep.subr.mxu0 0.0
        %262 = vmatpush1.msra.mxu0 0.0
        %263 = vmatprep.subr.mxu0 0.0
        %264 = vmatpush1.msra.mxu0 0.0
        %265 = vmatprep.subr.mxu0 0.0
        %266 = vmatpush1.msra.mxu0 0.0
        %267 = vmatprep.subr.mxu0 0.0
        %268 = vmatpush1.msra.mxu0 0.0
        %269 = vmatprep.subr.mxu0 0.0
        %270 = vmatpush1.msra.mxu0 0.0
        %271 = vmatprep.subr.mxu0 0.0
        %272 = vmatpush1.msra.mxu0 0.0
        %273 = vmatprep.subr.mxu0 0.0
        %274 = vmatpush1.msra.mxu0 0.0
        %275 = vmatprep.subr.mxu0 0.0
        %276 = vmatpush1.msra.mxu0 0.0
        %277 = vmatprep.subr.mxu0 0.0
        %278 = vmatpush1.msra.mxu0 0.0
        %279 = vmatprep.subr.mxu0 0.0
        %280 = vmatpush1.msra.mxu0 0.0
        %281 = vmatprep.subr.mxu0 0.0
        %282 = vmatpush1.msra.mxu0 0.0
        %283 = vmatprep.subr.mxu0 0.0
        %284 = vmatpush1.msra.mxu0 0.0
        %285 = vmatprep.subr.mxu0 0.0
        %286 = vmatpush1.msra.mxu0 0.0
        %287 = vmatprep.subr.mxu0 0.0
        %288 = vmatpush1.msra.mxu0 0.0
        %289 = vmatprep.subr.mxu0 0.0
        %290 = vmatpush1.msra.mxu0 0.0
        %291 = vmatprep.subr.mxu0 0.0
        %292 = vmatpush1.msra.mxu0 0.0
        %293 = vmatprep.subr.mxu0 0.0
        %294 = vmatpush1.msra.mxu0 0.0
        %295 = vmatprep.subr.mxu0 0.0
        %296 = vmatpush1.msra.mxu0 0.0
        %297 = vmatprep.subr.mxu0 0.0
        %298 = vmatpush1.msra.mxu0 0.0
        %299 = vmatprep.subr.mxu0 0.0
        %300 = vmatpush1.msra.mxu0 0.0
        %301 = vmatprep.subr.mxu0 0.0
        %302 = vmatpush1.msra.mxu0 0.0
        %303 = vmatprep.subr.mxu0 0.0
        %304 = vmatpush1.msra.mxu0 0.0
        %305 = vmatprep.subr.mxu0 0.0
        %306 = vmatpush1.msra.mxu0 0.0
        %307 = vmatprep.subr.mxu0 0.0
        %308 = vmatpush1.msra.mxu0 0.0
        %309 = vmatprep.subr.mxu0 0.0
        %310 = vmatpush1.msra.mxu0 0.0
        %311 = vmatprep.subr.mxu0 0.0
        %312 = vmatpush1.msra.mxu0 0.0
        %313 = vmatprep.subr.mxu0 0.0
        %314 = vmatpush1.msra.mxu0 0.0
        %315 = vmatprep.mubr.f32.mxu0 0.0
        %316 = vmatmul.mubr.f32.gmra.mrb[0].mxu0 %v249
        %v317 = vpop.f32.mrb[0].mxu0
        %v318 = vadd.f32 0.0, %v317
        %v319 = vpop.f32.mrb[0].mxu0
        %320 = vdwg.mxu0
        %v321 = vmax.f32 %v318, 0.0
        %322 = vst.msk [vmem:[%s161] sm:$0xff] %vm171, %v321
        %s323 = sand.u32 %s93, 1
        %s324 = scalar_lea.sflag [#allocation3], %s323
        %s325 = sand.u32 %s93, 1
        %s326 = smul.addr %s325, 8
        %s327 = scalar_lea.vmem [#allocation2], %s326
        // Predicated region
        $region33: #{tpu_custom_call.1} parent=31 // pred_check
          %p328 = pneg %p103
        $region34: #{tpu_custom_call.1} parent=31 // pred_check_branch
          %330 = sbr.rel (%p328) target = $region36
        $region35: #{tpu_custom_call.1} parent=31 // pred_region
          %s332 = ssub.s32 128, 128
          %333 = vsyncadd %s324, %s332
          %s334 = smul.addr %s17, 128
          %s335 = scalar_lea.hbm %s3, %s334
          %s337 = sshll.u32 %s327, 4
          %s338 = int_to_ptr.vmem [resolvable:$true] %s337
          %340 = dma.vmem_to_hbm [thread:$0]  %s338, 128, %s335, %s324
        $region36: #{tpu_custom_call.1} parent=31 // pred_fallthru
          _
      $region32: #{tpu_custom_call.1} parent=5 // pred_fallthru
        _
      %p341 = scmp.le.s32.totalorder 2, %s12
      // Predicated region
      $region37: #{tpu_custom_call.1} parent=5 // pred_check
        %p342 = pneg %p341
      $region38: #{tpu_custom_call.1} parent=5 // pred_check_branch
        %344 = sbr.rel (%p342) target = $region40
      $region39: #{tpu_custom_call.1} parent=5 // pred_region
        %s345 = ssub.s32 %s12, 2
        // Predicated region
        $region41: #{tpu_custom_call.1} parent=39 // pred_check
          %p346 = pneg %p109
        $region42: #{tpu_custom_call.1} parent=39 // pred_check_branch
          %348 = sbr.rel (%p346) target = $region44
        $region43: #{tpu_custom_call.1} parent=39 // pred_region
          %s349 = sand.u32 %s94, 1
          %s350 = scalar_lea.sflag [#allocation3], %s349
          %s351 = sand.u32 %s94, 1
          %s352 = smul.addr %s351, 8
          %s353 = scalar_lea.vmem [#allocation2], %s352
          %354 = dma.done %s350, 128
        $region44: #{tpu_custom_call.1} parent=39 // pred_fallthru
          _
      $region40: #{tpu_custom_call.1} parent=5 // pred_fallthru
        _
    $region6: #{tpu_custom_call.1} parent=1 // loop_footer
      %s16 = sadd.s32 1, %s12
    $region7: #{tpu_custom_call.1} parent=1 // loop_footer_branch
      %11 = sbr.rel target = $region3
    $region8: #{tpu_custom_call.1} parent=1 // loop_exit
      _
    %355 = vsyncpa [#allocation3], 1
    %s356 = scalar_lea.sflag [#allocation3], 1
    %357 = vsyncpa %s356, 1

</llo_original>
